<compile_context>
chip_gen: v7x
topology: tpu7x:2x2x1
jax: 0.10.0
libtpu: 0.0.40
codegen_flags: <defaults>
</compile_context>

<pallas_src>
import functools
import math

import jax
import jax.numpy as jnp
from jax import lax
from jax.experimental import pallas as pl
from jax.experimental.pallas import tpu as pltpu

_LANE = 128
_WIDTHS = (8192, 4096, 2048, 1024, 512, 256, 128)


def _round_up(x, m):
    return ((x + m - 1) // m) * m


def _sublane_multiple(dtype):
    # f32 -> 8, bf16/f16 -> 16, int8/fp8 -> 32 (packed-sublane tiling constraint).
    itemsize = jnp.dtype(dtype).itemsize
    return max(8, 32 // itemsize)


@functools.lru_cache(maxsize=1)
def _tpu_config():
    """Return (target_block_bytes, vmem_limit_bytes, num_tensorcores) for this chip."""
    vmem_cap = None
    try:
        vmem_cap = int(pltpu.get_tpu_info().vmem_capacity_bytes)
    except Exception:
        vmem_cap = None

    num_cores = 1
    try:
        kind = jax.devices()[0].device_kind.lower()
        # v4 and v7x expose 2 TensorCores per chip (megacore); v5e/v6e have 1.
        if ("v4" in kind) or ("v7" in kind) or ("7x" in kind):
            num_cores = 2
    except Exception:
        pass

    if vmem_cap is None:
        vmem_cap = 64 * 1024 * 1024  # conservative default (v7x-class)

    if vmem_cap <= 80 * 1024 * 1024:
        # v7x-class: 64 MiB VMEM/TC.  4 MiB blocks -> (in + out) double-buffered
        # = 16 MiB, comfortably under the 32 MiB scoped-VMEM limit.
        return 4 * 1024 * 1024, 32 * 1024 * 1024, num_cores
    # v5e/v6e: 128 MiB physical VMEM.  8 MiB blocks -> 32 MiB double-buffered,
    # well under an explicit 64 MiB limit (mandatory on v5e whose default is 16 MiB).
    return 8 * 1024 * 1024, 64 * 1024 * 1024, num_cores


def _choose_layout(n, sub):
    """Pick (lane_width C, rows) for a flat array of n elements (n % 128 == 0)."""
    for c in _WIDTHS:
        if n % c == 0 and n // c >= sub:
            return c, n // c
    for c in _WIDTHS:
        if n % c == 0:
            return c, n // c
    raise ValueError("internal: _choose_layout requires n % 128 == 0")


def _int_pow_pos(x, n):
    """x**n for n >= 1 via exponentiation-by-squaring, unrolled at trace time."""
    result = None
    base = x
    while n:
        if n & 1:
            result = base if result is None else result * base
        n >>= 1
        if n:
            base = base * base
    return result


def _apply_int_pow(x, e, in_kernel):
    if e == 0:
        return jnp.ones_like(x)
    p = _int_pow_pos(x, abs(e))
    if e < 0:
        if in_kernel:
            # Exact reciprocal to match torch.pow; switch to approx=True (EUP vrcp)
            # if last-ulp accuracy is not required.
            return pl.reciprocal(p, approx=False)
        return jnp.ones_like(p) / p
    return p


def _pow_math(x, exponent, in_kernel):
    """Shared math for the kernel body and the (tiny) unaligned-tail path."""
    if isinstance(exponent, int):
        return _apply_int_pow(x, exponent, in_kernel)

    e = float(exponent)
    x32 = x.astype(jnp.float32)
    if 2.0 * e == float(int(2.0 * e)):
        # Half-integer exponent: one sqrt/rsqrt (single EUP push) plus unrolled
        # multiplies instead of exp(e*log(x)) (two EUP transcendentals).  This
        # keeps the EUP slot from becoming the binding unit on v7x / narrow dtypes.
        if e > 0:
            k = int(math.floor(e))
            frac = jnp.sqrt(x32)
        else:
            k = int(math.ceil(e))
            frac = lax.rsqrt(x32)
        if k == 0:
            return frac
        return _apply_int_pow(x32, k, in_kernel) * frac

    # General fractional exponent: pow(x, y) = exp(y * log(x)).
    # Matches torch.pow semantics (NaN for negative bases, 0/inf at x == 0).
    return jnp.exp(jnp.float32(e) * jnp.log(x32))


def _pow_kernel(x_ref, o_ref, *, exponent):
    o_ref[...] = _pow_math(x_ref[...], exponent, in_kernel=True).astype(o_ref.dtype)


class PallasPow:
    """JAX/Pallas re-implementation of changan_plugin_pytorch.nn.Pow.

    The exponent is a static scalar bound to the module on first use, exactly
    mirroring `exponent_assign_and_check`.
    """

    def __init__(self):
        self.exponent = None

    def _assign_and_check(self, exponent):
        if not isinstance(exponent, int):
            # NOTE: requires a concrete (non-traced) scalar, mirroring the
            # static-exponent contract of the original module.
            arr = jnp.asarray(exponent)
            assert arr.size == 1, "Only support power which exponent is scalar"
            exponent = float(arr.reshape(()))
            if exponent == int(exponent):
                exponent = int(exponent)
        if self.exponent is None:
            self.exponent = exponent
        else:
            assert self.exponent == exponent, (
                f"This Pow is only used for exponent {self.exponent}, "
                f"but get {exponent}"
            )
        return self.exponent

    @staticmethod
    def _pallas_pow_flat(flat, exponent, dtype):
        """Run the Pallas kernel over a flat array whose size is a multiple of 128."""
        n = flat.shape[0]
        sub = _sublane_multiple(dtype)
        itemsize = jnp.dtype(dtype).itemsize
        block_bytes, vmem_limit, num_cores = _tpu_config()

        C, rows = _choose_layout(n, sub)
        slab = flat.reshape(rows, C)

        # Generation-aware row tiles (multiple of the dtype sublane group).
        target_rows = max(sub, (block_bytes // (C * itemsize)) // sub * sub)
        if target_rows < rows:
            tile_r = target_rows
        elif num_cores >= 2 and rows >= 2 * sub:
            # Split so the grid has >= 2 blocks only on 2-TC chips (v4/v7x), so the
            # "parallel" axis can be megacore-sharded. On 1-TC v5e/v6e the grid is a
            # serial loop and a forced split is pure per-step overhead.
            tile_r = _round_up(pl.cdiv(rows, 2), sub)
        else:
            tile_r = rows  # block row dim == full array dim (always legal)
        grid = pl.cdiv(rows, tile_r)

        # NOTE: input_output_aliases={0: 0} would be legal here (same shape/dtype)
        # but only helps when the caller donates the buffer; skipped for safety.
        kernel = functools.partial(_pow_kernel, exponent=exponent)
        out_slab = pl.pallas_call(
            kernel,
            out_shape=jax.ShapeDtypeStruct((rows, C), dtype),
            grid=(grid,),
            in_specs=[pl.BlockSpec((tile_r, C), lambda i: (i, 0))],
            out_specs=pl.BlockSpec((tile_r, C), lambda i: (i, 0)),
            compiler_params=pltpu.CompilerParams(
                dimension_semantics=("parallel",),
                vmem_limit_bytes=vmem_limit,
            ),
        )(slab)
        return out_slab.reshape(-1)

    def __call__(self, data, exponent):
        exponent = self._assign_and_check(exponent)

        orig_shape = data.shape
        orig_dtype = data.dtype

        if (not isinstance(exponent, int)) or exponent < 0:
            if not jnp.issubdtype(orig_dtype, jnp.floating):
                raise ValueError(
                    "Negative or fractional exponents require a floating dtype "
                    "(matches torch.pow behavior)."
                )

        flat = data.reshape(-1)
        n = flat.shape[0]
        if n == 0:
            return flat.reshape(orig_shape)

        bulk_n = (n // _LANE) * _LANE
        tail_n = n - bulk_n

        parts = []
        if bulk_n:
            bulk = flat[:bulk_n] if tail_n else flat
            parts.append(self._pallas_pow_flat(bulk, exponent, orig_dtype))
        if tail_n:
            # Tiny (<128 elem) unaligned tail: compute outside the kernel instead
            # of materializing a padded copy of the full input in HBM.
            tail = flat[bulk_n:]
            parts.append(_pow_math(tail, exponent, in_kernel=False).astype(orig_dtype))

        out_flat = parts[0] if len(parts) == 1 else jnp.concatenate(parts)
        return out_flat.reshape(orig_shape)


if __name__ == "__main__":
    key = jax.random.PRNGKey(0)
    x = jax.random.normal(key, (2, 4, 16, 16), dtype=jnp.float32)

    # Integer exponent (the common case).
    pow_mod = PallasPow()
    y = jax.block_until_ready(pow_mod(x, 2))
    y_ref = jnp.power(x, 2)
    assert y.shape == x.shape and y.dtype == x.dtype
    assert jnp.allclose(y, y_ref, rtol=1e-5, atol=1e-5), "mismatch vs x**2 reference"

    # Calling again with the same exponent must succeed (module state check).
    y2 = jax.block_until_ready(pow_mod(x, 2))
    assert jnp.allclose(y2, y_ref, rtol=1e-5, atol=1e-5)

    x_pos = jnp.abs(x) + 0.1

    # Fractional exponent path (sqrt special case).
    pow_half = PallasPow()
    z = jax.block_until_ready(pow_half(x_pos, 0.5))
    assert jnp.allclose(z, jnp.power(x_pos, 0.5), rtol=1e-5, atol=1e-5), "sqrt mismatch"

    # Half-integer exponent (x^1.5 = x * sqrt(x) path).
    pow_1p5 = PallasPow()
    w = jax.block_until_ready(pow_1p5(x_pos, 1.5))
    assert jnp.allclose(w, jnp.power(x_pos, 1.5), rtol=1e-5, atol=1e-5), "x^1.5 mismatch"

    # Negative integer exponent.
    pow_neg = PallasPow()
    r = jax.block_until_ready(pow_neg(x_pos, -2))
    assert jnp.allclose(r, jnp.power(x_pos, -2.0), rtol=1e-5, atol=1e-5), "x^-2 mismatch"

    # Unaligned numel (exercises the bulk + jnp tail path, no padding copy).
    xu = jax.random.normal(jax.random.PRNGKey(1), (5, 50), dtype=jnp.float32)  # 250 elems
    pow_u = PallasPow()
    yu = jax.block_until_ready(pow_u(xu, 3))
    assert jnp.allclose(yu, jnp.power(xu, 3), rtol=1e-5, atol=1e-5), "unaligned mismatch"

    print("KERNEL_OK")
</pallas_src>

<mosaic_0001>
module attributes {stable_mosaic.version = 11 : i64} {
  func.func @_pow_kernel(%arg0: i32, %arg1: memref<8x256xf32, #tpu.memory_space<vmem>>, %arg2: memref<8x256xf32, #tpu.memory_space<vmem>>) attributes {dimension_semantics = [#tpu.dimension_semantics<parallel>], iteration_bounds = array<i64: 1>, scalar_prefetch = 0 : i64, scratch_operands = 0 : i64, tpu.core_type = #tpu.core_type<tc>, window_params = [{transform_indices = @transform_0, window_bounds = array<i64: 8, 256>}, {transform_indices = @transform_1, window_bounds = array<i64: 8, 256>}]} {
    %c0 = arith.constant 0 : index
    %c0_0 = arith.constant 0 : index
    %0 = vector.load %arg1[%c0, %c0_0] : memref<8x256xf32, #tpu.memory_space<vmem>>, vector<8x256xf32>
    %1 = arith.mulf %0, %0 : vector<8x256xf32>
    %c0_1 = arith.constant 0 : index
    %c0_2 = arith.constant 0 : index
    %2 = vector.load %arg2[%c0_1, %c0_2] : memref<8x256xf32, #tpu.memory_space<vmem>>, vector<8x256xf32>
    tpu.vector_store %arg2[%c0_1, %c0_2], %1 {strides = array<i32>} : memref<8x256xf32, #tpu.memory_space<vmem>>, vector<8x256xf32>,
    return
  }
  func.func @transform_0(%arg0: i32) -> (i32, i32) {
    %c0_i32 = arith.constant 0 : i32
    %c0_i32_0 = arith.constant 0 : i32
    return %arg0, %c0_i32 : i32, i32
  }
  func.func @transform_1(%arg0: i32) -> (i32, i32) {
    %c0_i32 = arith.constant 0 : i32
    %c0_i32_0 = arith.constant 0 : i32
    return %arg0, %c0_i32 : i32, i32
  }
}

</mosaic_0001>

<llo_original>
// kernel: tpu_custom_call.1
$region0: #{tpu_custom_call.1}
  #allocation0 [shape = 'u32[]', space=smem, size = 0x4, offset = 0x4, fixed_abs, tag = 'smem constant byte address 0x4 - core index']
  #allocation1 [shape = 'u32[144,128]{1,0:T(1,128)}', space=vmem, size = 0x12000, scoped, tag = 'internal scratch']
  %s0 = inlined_call_operand.hbm [shape: f32[8,256], index: 0, kind: input, shape index: {}]
  %s1 = inlined_call_operand.hbm [shape: f32[8,256], index: 1, kind: output, shape index: {}]
  %s2 = sld [smem:[#allocation0]]
  $region18: #{tpu_custom_call.1} parent=0
    _
  %s4 = ssub.s32 1, %s2
  %s5 = scalar_select 0, %s4, %s2
  $region1: #{tpu_custom_call.1} parent=0
    #allocation2 [shape = 'u8[8192]{0}', space=vmem, size = 0x2000, scoped, tag = 'input window, operand 0, single buffered']
    #allocation3 [shape = 's32[1]{0}', space=sflag, size = 0x4, scoped, tag = 'scoped memory for tpu_custom_call.1']
    #allocation4 [shape = 's32[1]{0}', space=sflag, size = 0x4, scoped, tag = 'scoped memory for tpu_custom_call.1']
    #allocation5 [shape = 'u8[8192]{0}', space=vmem, size = 0x2000, scoped, tag = 'output window, operand 0, single buffered']
    %6 = vsyncpa [#allocation3], 0
    %7 = vsyncpa [#allocation4], 0
    // Predicated region
    $region2: #{tpu_custom_call.1} parent=1 // pred_check
      _
    $region3: #{tpu_custom_call.1} parent=1 // pred_check_branch
      %9 = sbr.rel (0) target = $region5
    $region4: #{tpu_custom_call.1} parent=1 // pred_region
      %s11 = ssub.s32 256, 256
      %12 = vsyncadd [#allocation3], %s11
      %s14 = sshll.u32 [#allocation2], 4
      %s15 = int_to_ptr.vmem [resolvable:$true] %s14
      %17 = dma.hbm_to_vmem [thread:$0]  %s0, 256, %s15, [#allocation3]
    $region5: #{tpu_custom_call.1} parent=1 // pred_fallthru
      _
    // Predicated region
    $region6: #{tpu_custom_call.1} parent=1 // pred_check
      _
    $region7: #{tpu_custom_call.1} parent=1 // pred_check_branch
      %19 = sbr.rel (0) target = $region9
    $region8: #{tpu_custom_call.1} parent=1 // pred_region
      %20 = dma.done [#allocation3], 256
    $region9: #{tpu_custom_call.1} parent=1 // pred_fallthru
      _
    %v21 = vld [vmem:[#allocation2] sm:$0xff]
    %v22 = vld [vmem:[#allocation2 + $0x8] sm:$0xff]
    %v23 = vmul.f32 %v21, %v21
    %v24 = vmul.f32 %v22, %v22
    %25 = vst [vmem:[#allocation5] sm:$0xff] %v23
    %26 = vst [vmem:[#allocation5 + $0x8] sm:$0xff] %v24
    // Predicated region
    $region10: #{tpu_custom_call.1} parent=1 // pred_check
      _
    $region11: #{tpu_custom_call.1} parent=1 // pred_check_branch
      %28 = sbr.rel (0) target = $region13
    $region12: #{tpu_custom_call.1} parent=1 // pred_region
      %s30 = ssub.s32 256, 256
      %31 = vsyncadd [#allocation4], %s30
      %s33 = sshll.u32 [#allocation5], 4
      %s34 = int_to_ptr.vmem [resolvable:$true] %s33
      %36 = dma.vmem_to_hbm [thread:$0]  %s34, 256, %s1, [#allocation4]
    $region13: #{tpu_custom_call.1} parent=1 // pred_fallthru
      _
    // Predicated region
    $region14: #{tpu_custom_call.1} parent=1 // pred_check
      _
    $region15: #{tpu_custom_call.1} parent=1 // pred_check_branch
      %38 = sbr.rel (0) target = $region17
    $region16: #{tpu_custom_call.1} parent=1 // pred_region
      %39 = dma.done [#allocation4], 256
    $region17: #{tpu_custom_call.1} parent=1 // pred_fallthru
      _
    %40 = vsyncpa [#allocation3], 1
    %41 = vsyncpa [#allocation4], 1

</llo_original>
